<compile_context>
chip_gen: v6e
topology: v6e:2x2x1
jax: 0.10.0
libtpu: 0.0.40
codegen_flags: <defaults>
</compile_context>

<pallas_src>
import functools

import jax
import jax.numpy as jnp
from jax.experimental import pallas as pl
from jax.experimental.pallas import tpu as pltpu

INPUT_DIM = 8
HIDDEN_DIM = 32
NUM_CLASSES = 10
NUM_LAYERS = 3
BN_EPS = 1e-5
LANE = 128  # lane-padded feature width used inside the kernel


# ----------------------------------------------------------------------------
# Fused Pallas kernel (entire model forward)
# ----------------------------------------------------------------------------
def _make_fused_kernel(num_layers: int, use_batch_stats: bool):
    def kernel(a_ref, p_ref, x_ref, w_ref, v_ref, wc_ref, emb_ref, out_ref):
        # a_ref  : [N, N]               bf16  row-normalized adjacency (mean aggregation)
        # p_ref  : [G_pad, N]           bf16  per-graph mean-pooling matrix
        # x_ref  : [N, LANE]            bf16  lane-padded node features
        # w_ref  : [2L, LANE, LANE]     bf16  per layer: [2l] = W_l (BN-folded in eval),
        #                                     [2l+1] = W_r
        # v_ref  : [L+1, K, LANE]       f32   per-layer vectors (K=1 eval: fused bias;
        #                                     K=3 train: b, gamma, beta); row L = cls bias
        # wc_ref : [LANE, LANE]         bf16  padded classifier weight
        # emb_ref: [G_pad, LANE]        f32   pooled embedding (padded)
        # out_ref: [G_pad, LANE]        f32   logits (padded)
        a = a_ref[...]
        h = x_ref[...]                                   # bf16 throughout the layer loop

        for l in range(num_layers):
            # mean neighbour aggregation on the MXU (bf16 x bf16 -> f32 accumulate)
            agg = jnp.dot(a, h, preferred_element_type=jnp.float32).astype(jnp.bfloat16)
            vec = v_ref[l]                               # [K, LANE] f32
            # SAGEConv as two K=128 matmuls summed (no [N, 2*LANE] concat intermediate)
            pre = (jnp.dot(agg, w_ref[2 * l], preferred_element_type=jnp.float32)
                   + jnp.dot(h, w_ref[2 * l + 1], preferred_element_type=jnp.float32)
                   + vec[0:1])
            if use_batch_stats:
                # training-mode BN: one-pass batch statistics (biased variance)
                mean = jnp.mean(pre, axis=0, keepdims=True)
                var = jnp.maximum(
                    jnp.mean(pre * pre, axis=0, keepdims=True) - mean * mean, 0.0)
                pre = (vec[1:2] * (pre - mean) * jax.lax.rsqrt(var + BN_EPS)
                       + vec[2:3])
            # (eval-mode BN was folded into W_l/W_r/bias in the wrapper)
            # ReLU; dropout between layers is identity at inference.
            h = jnp.maximum(pre, 0.0).astype(jnp.bfloat16)

        # global_mean_pool (P @ h) and classifier, from the same kernel
        emb = jnp.dot(p_ref[...], h, preferred_element_type=jnp.float32)
        emb_ref[...] = emb
        out_ref[...] = (jnp.dot(emb.astype(jnp.bfloat16), wc_ref[...],
                                preferred_element_type=jnp.float32)
                        + v_ref[num_layers][0:1])

    return kernel


# ----------------------------------------------------------------------------
# Wrapper: padding / folding / stacking glue + pallas_call
# ----------------------------------------------------------------------------
_VMEM = pl.BlockSpec(memory_space=pltpu.MemorySpace.VMEM)


def _pad_cols(m, width, value=0.0):
    return jnp.pad(m, ((0, 0), (0, width - m.shape[1])), constant_values=value)


def _pad_weight(w, lane):
    fin, fout = w.shape
    return jnp.zeros((lane, lane), jnp.float32).at[:fin, :fout].set(w)


def build_adjacency(edge_index, num_nodes):
    # edge_index: [2, E], row 0 = source, row 1 = destination (PyG convention).
    # Duplicate edges are summed (matches scatter-mean weighting with duplicates).
    src, dst = edge_index[0], edge_index[1]
    a = jnp.zeros((num_nodes, num_nodes), jnp.float32).at[dst, src].add(1.0)
    deg = a.sum(axis=1, keepdims=True)
    # normalize and cast to bf16 in one expression (isolated nodes aggregate to 0)
    return (a / jnp.maximum(deg, 1.0)).astype(jnp.bfloat16)


def build_pool_matrix(batch, num_graphs_padded):
    p = (batch[None, :] == jnp.arange(num_graphs_padded)[:, None]).astype(jnp.float32)
    counts = p.sum(axis=1, keepdims=True)
    return (p / jnp.maximum(counts, 1.0)).astype(jnp.bfloat16)


def _derive_vmem_limit(n, g_pad, num_layers, k_vec):
    """Footprint-derived VMEM limit with headroom, capped at ~75% of physical VMEM."""
    in_bytes = (2 * n * n                         # A (bf16)
                + 2 * g_pad * n                   # P (bf16)
                + 2 * n * LANE                    # x (bf16)
                + 2 * 2 * num_layers * LANE * LANE  # stacked weights (bf16)
                + 4 * (num_layers + 1) * k_vec * LANE  # vecs (f32)
                + 2 * LANE * LANE)                # classifier weight (bf16)
    out_bytes = 2 * g_pad * LANE * 4
    work_bytes = 6 * n * LANE * 4 + 2 * n * n     # per-layer intermediates estimate
    limit = 2 * (in_bytes + out_bytes) + work_bytes + (8 << 20)
    try:
        cap = int(0.75 * pltpu.get_tpu_info().vmem_capacity_bytes)
    except Exception:  # pragma: no cover - conservative fallback (safe on v7x's 64 MiB)
        cap = 48 << 20
    return int(max(16 << 20, min(limit, cap)))


@functools.partial(jax.jit,
                   static_argnames=("num_graphs", "return_embedding", "bn_batch_stats"))
def sage_model_forward(params, x, edge_index, batch, num_graphs,
                       return_embedding=False, bn_batch_stats=False):
    n = x.shape[0]
    hidden = params["layers"][0]["w_l"].shape[1]
    num_classes = params["cls_w"].shape[1]
    num_layers = len(params["layers"])
    g_pad = max(8, ((num_graphs + 7) // 8) * 8)   # sublane-pad graph count

    a_norm = build_adjacency(edge_index, n)                      # [N, N]     bf16
    pool_mat = build_pool_matrix(batch, g_pad)                   # [G_pad, N] bf16
    x_p = _pad_cols(x, LANE).astype(jnp.bfloat16)                # [N, LANE]  bf16

    k_vec = 3 if bn_batch_stats else 1
    w_rows, v_rows = [], []
    for lp in params["layers"]:
        if bn_batch_stats:
            # BN stays in-kernel (batch statistics); pass b / gamma / beta through.
            w_l, w_r = lp["w_l"], lp["w_r"]
            v = jnp.concatenate([_pad_cols(lp["b"], LANE),
                                 _pad_cols(lp["gamma"], LANE),
                                 _pad_cols(lp["beta"], LANE)], axis=0)
        else:
            # Fold eval-mode BN (running stats) into the conv weights and bias.
            s = lp["gamma"] * jax.lax.rsqrt(lp["running_var"] + BN_EPS)     # [1, fout]
            w_l = lp["w_l"] * s
            w_r = lp["w_r"] * s
            b_fused = lp["b"] * s + lp["beta"] - lp["running_mean"] * s
            v = _pad_cols(b_fused, LANE)
        w_rows.append(_pad_weight(w_l, LANE))
        w_rows.append(_pad_weight(w_r, LANE))
        v_rows.append(v)
    # last slot of vecs carries the (padded) classifier bias
    cls_b_row = jnp.zeros((k_vec, LANE), jnp.float32).at[0:1].set(
        _pad_cols(params["cls_b"], LANE))

    w = jnp.stack(w_rows).astype(jnp.bfloat16)                   # [2L, LANE, LANE] bf16
    vecs = jnp.stack(v_rows + [cls_b_row])                       # [L+1, K, LANE]   f32
    wc = _pad_weight(params["cls_w"], LANE).astype(jnp.bfloat16)  # [LANE, LANE]    bf16

    emb_p, logits_p = pl.pallas_call(
        _make_fused_kernel(num_layers, bn_batch_stats),
        out_shape=(jax.ShapeDtypeStruct((g_pad, LANE), jnp.float32),
                   jax.ShapeDtypeStruct((g_pad, LANE), jnp.float32)),
        in_specs=[_VMEM] * 6,
        out_specs=(_VMEM, _VMEM),
        compiler_params=pltpu.CompilerParams(
            vmem_limit_bytes=_derive_vmem_limit(n, g_pad, num_layers, k_vec)),
    )(a_norm, pool_mat, x_p, w, vecs, wc)

    if return_embedding:
        return emb_p[:num_graphs, :hidden]
    return logits_p[:num_graphs, :num_classes]


# ----------------------------------------------------------------------------
# Parameter init (matches the PyTorch module's layer structure)
# ----------------------------------------------------------------------------
def init_params(key, input_dim=INPUT_DIM, hidden_dim=HIDDEN_DIM,
                num_classes=NUM_CLASSES, num_layers=NUM_LAYERS):
    params = {"layers": []}
    dims = [input_dim] + [hidden_dim] * num_layers
    for i in range(num_layers):
        key, k1, k2, k3 = jax.random.split(key, 4)
        fin, fout = dims[i], dims[i + 1]
        scale = 1.0 / jnp.sqrt(jnp.float32(fin))
        params["layers"].append({
            "w_l": jax.random.uniform(k1, (fin, fout), jnp.float32, -scale, scale),
            "w_r": jax.random.uniform(k2, (fin, fout), jnp.float32, -scale, scale),
            "b": jax.random.uniform(k3, (1, fout), jnp.float32, -scale, scale),
            "gamma": jnp.ones((1, fout), jnp.float32),
            "beta": jnp.zeros((1, fout), jnp.float32),
            "running_mean": jnp.zeros((1, fout), jnp.float32),
            "running_var": jnp.ones((1, fout), jnp.float32),
        })
    key, k1, k2 = jax.random.split(key, 3)
    scale = 1.0 / jnp.sqrt(jnp.float32(hidden_dim))
    params["cls_w"] = jax.random.uniform(k1, (hidden_dim, num_classes), jnp.float32, -scale, scale)
    params["cls_b"] = jax.random.uniform(k2, (1, num_classes), jnp.float32, -scale, scale)
    return params


# ----------------------------------------------------------------------------
# Demo
# ----------------------------------------------------------------------------
if __name__ == "__main__":
    key = jax.random.PRNGKey(0)
    key, pkey, xkey = jax.random.split(key, 3)

    num_nodes = 16
    num_graphs = 2

    x = jax.random.normal(xkey, (num_nodes, INPUT_DIM), jnp.float32)

    # deterministic edges: a bidirectional ring inside each of the 2 graphs
    per_graph = num_nodes // num_graphs
    srcs, dsts = [], []
    for g in range(num_graphs):
        base = g * per_graph
        for i in range(per_graph):
            a_node = base + i
            b_node = base + (i + 1) % per_graph
            srcs += [a_node, b_node]
            dsts += [b_node, a_node]
    edge_index = jnp.array([srcs, dsts], dtype=jnp.int32)  # [2, E]

    batch = jnp.array([g for g in range(num_graphs) for _ in range(per_graph)],
                      dtype=jnp.int32)

    params = init_params(pkey)

    # eval-mode forward (BN folded into weights, dropout identity)
    logits = sage_model_forward(params, x, edge_index, batch, num_graphs)
    logits = jax.block_until_ready(logits)
    assert logits.shape == (num_graphs, NUM_CLASSES)
    assert jnp.all(jnp.isfinite(logits))

    # train-mode BN variant (batch statistics kept in-kernel) and embedding path
    logits_bn = sage_model_forward(params, x, edge_index, batch, num_graphs,
                                   bn_batch_stats=True)
    emb = sage_model_forward(params, x, edge_index, batch, num_graphs,
                             return_embedding=True)
    logits_bn, emb = jax.block_until_ready((logits_bn, emb))
    assert logits_bn.shape == (num_graphs, NUM_CLASSES)
    assert emb.shape == (num_graphs, HIDDEN_DIM)
    assert jnp.all(jnp.isfinite(logits_bn)) and jnp.all(jnp.isfinite(emb))

    print("KERNEL_OK")
</pallas_src>

<mosaic_0001>
module attributes {stable_mosaic.version = 11 : i64} {
  func.func private @main(%arg0: i32) attributes {dimension_semantics = [#tpu.dimension_semantics<core_parallel>], iteration_bounds = array<i64: 2>, tpu.core_type = #tpu.core_type<sc_scalar_subcore>, window_params = []} {
    return
  }
}

module attributes {stable_mosaic.version = 11 : i64} {
  func.func private @main(%arg0: i32) attributes {dimension_semantics = [#tpu.dimension_semantics<core_parallel>], iteration_bounds = array<i64: 2>, tpu.core_type = #tpu.core_type<sc_scalar_subcore>, window_params = []} {
    return
  }
}

module attributes {stable_mosaic.version = 11 : i64} {
  func.func @kernel(%arg0: memref<16x16xbf16, #tpu.memory_space<vmem>>, %arg1: memref<8x16xbf16, #tpu.memory_space<vmem>>, %arg2: memref<16x128xbf16, #tpu.memory_space<vmem>>, %arg3: memref<6x128x128xbf16, #tpu.memory_space<vmem>>, %arg4: memref<4x1x128xf32, #tpu.memory_space<vmem>>, %arg5: memref<128x128xbf16, #tpu.memory_space<vmem>>, %arg6: memref<8x128xf32, #tpu.memory_space<vmem>>, %arg7: memref<8x128xf32, #tpu.memory_space<vmem>>) attributes {dimension_semantics = [], scalar_prefetch = 0 : i64, scratch_operands = 0 : i64, tpu.core_type = #tpu.core_type<tc>} {
    %c0 = arith.constant 0 : index
    %c0_0 = arith.constant 0 : index
    %0 = vector.load %arg0[%c0, %c0_0] : memref<16x16xbf16, #tpu.memory_space<vmem>>, vector<16x16xbf16>
    %c0_1 = arith.constant 0 : index
    %c0_2 = arith.constant 0 : index
    %1 = vector.load %arg2[%c0_1, %c0_2] : memref<16x128xbf16, #tpu.memory_space<vmem>>, vector<16x128xbf16>
    %cst = arith.constant dense<0.000000e+00> : vector<16x128xf32>
    %2 = tpu.matmul %0, %1, %cst {dimension_numbers = #tpu.dot_dimension_numbers<[1], [0], [0], [1], [0, 0, 1, 1], [], []>} : vector<16x16xbf16>, vector<16x128xbf16>, vector<16x128xf32> -> vector<16x128xf32>
    %3 = arith.truncf %2 : vector<16x128xf32> to vector<16x128xbf16>
    %c0_3 = arith.constant 0 : index
    %c0_4 = arith.constant 0 : index
    %c0_5 = arith.constant 0 : index
    %4 = vector.load %arg4[%c0_3, %c0_4, %c0_5] : memref<4x1x128xf32, #tpu.memory_space<vmem>>, vector<1x1x128xf32>
    %5 = vector.shape_cast %4 : vector<1x1x128xf32> to vector<1x128xf32>
    %c0_6 = arith.constant 0 : index
    %c0_7 = arith.constant 0 : index
    %c0_8 = arith.constant 0 : index
    %6 = vector.load %arg3[%c0_6, %c0_7, %c0_8] : memref<6x128x128xbf16, #tpu.memory_space<vmem>>, vector<1x128x128xbf16>
    %7 = vector.shape_cast %6 : vector<1x128x128xbf16> to vector<128x128xbf16>
    %cst_9 = arith.constant dense<0.000000e+00> : vector<16x128xf32>
    %8 = tpu.matmul %3, %7, %cst_9 {dimension_numbers = #tpu.dot_dimension_numbers<[1], [0], [0], [1], [0, 0, 1, 1], [], []>} : vector<16x128xbf16>, vector<128x128xbf16>, vector<16x128xf32> -> vector<16x128xf32>
    %c1 = arith.constant 1 : index
    %c0_10 = arith.constant 0 : index
    %c0_11 = arith.constant 0 : index
    %9 = vector.load %arg3[%c1, %c0_10, %c0_11] : memref<6x128x128xbf16, #tpu.memory_space<vmem>>, vector<1x128x128xbf16>
    %10 = vector.shape_cast %9 : vector<1x128x128xbf16> to vector<128x128xbf16>
    %cst_12 = arith.constant dense<0.000000e+00> : vector<16x128xf32>
    %11 = tpu.matmul %1, %10, %cst_12 {dimension_numbers = #tpu.dot_dimension_numbers<[1], [0], [0], [1], [0, 0, 1, 1], [], []>} : vector<16x128xbf16>, vector<128x128xbf16>, vector<16x128xf32> -> vector<16x128xf32>
    %12 = arith.addf %8, %11 : vector<16x128xf32>
    %13 = vector.broadcast %5 : vector<1x128xf32> to vector<16x128xf32>
    %14 = arith.addf %12, %13 : vector<16x128xf32>
    %cst_13 = arith.constant 0.000000e+00 : f32
    %15 = vector.broadcast %cst_13 : f32 to vector<16x128xf32>
    %16 = arith.maximumf %14, %15 : vector<16x128xf32>
    %17 = arith.truncf %16 : vector<16x128xf32> to vector<16x128xbf16>
    %cst_14 = arith.constant dense<0.000000e+00> : vector<16x128xf32>
    %18 = tpu.matmul %0, %17, %cst_14 {dimension_numbers = #tpu.dot_dimension_numbers<[1], [0], [0], [1], [0, 0, 1, 1], [], []>} : vector<16x16xbf16>, vector<16x128xbf16>, vector<16x128xf32> -> vector<16x128xf32>
    %19 = arith.truncf %18 : vector<16x128xf32> to vector<16x128xbf16>
    %c1_15 = arith.constant 1 : index
    %c0_16 = arith.constant 0 : index
    %c0_17 = arith.constant 0 : index
    %20 = vector.load %arg4[%c1_15, %c0_16, %c0_17] : memref<4x1x128xf32, #tpu.memory_space<vmem>>, vector<1x1x128xf32>
    %21 = vector.shape_cast %20 : vector<1x1x128xf32> to vector<1x128xf32>
    %c2 = arith.constant 2 : index
    %c0_18 = arith.constant 0 : index
    %c0_19 = arith.constant 0 : index
    %22 = vector.load %arg3[%c2, %c0_18, %c0_19] : memref<6x128x128xbf16, #tpu.memory_space<vmem>>, vector<1x128x128xbf16>
    %23 = vector.shape_cast %22 : vector<1x128x128xbf16> to vector<128x128xbf16>
    %cst_20 = arith.constant dense<0.000000e+00> : vector<16x128xf32>
    %24 = tpu.matmul %19, %23, %cst_20 {dimension_numbers = #tpu.dot_dimension_numbers<[1], [0], [0], [1], [0, 0, 1, 1], [], []>} : vector<16x128xbf16>, vector<128x128xbf16>, vector<16x128xf32> -> vector<16x128xf32>
    %c3 = arith.constant 3 : index
    %c0_21 = arith.constant 0 : index
    %c0_22 = arith.constant 0 : index
    %25 = vector.load %arg3[%c3, %c0_21, %c0_22] : memref<6x128x128xbf16, #tpu.memory_space<vmem>>, vector<1x128x128xbf16>
    %26 = vector.shape_cast %25 : vector<1x128x128xbf16> to vector<128x128xbf16>
    %cst_23 = arith.constant dense<0.000000e+00> : vector<16x128xf32>
    %27 = tpu.matmul %17, %26, %cst_23 {dimension_numbers = #tpu.dot_dimension_numbers<[1], [0], [0], [1], [0, 0, 1, 1], [], []>} : vector<16x128xbf16>, vector<128x128xbf16>, vector<16x128xf32> -> vector<16x128xf32>
    %28 = arith.addf %24, %27 : vector<16x128xf32>
    %29 = vector.broadcast %21 : vector<1x128xf32> to vector<16x128xf32>
    %30 = arith.addf %28, %29 : vector<16x128xf32>
    %cst_24 = arith.constant 0.000000e+00 : f32
    %31 = vector.broadcast %cst_24 : f32 to vector<16x128xf32>
    %32 = arith.maximumf %30, %31 : vector<16x128xf32>
    %33 = arith.truncf %32 : vector<16x128xf32> to vector<16x128xbf16>
    %cst_25 = arith.constant dense<0.000000e+00> : vector<16x128xf32>
    %34 = tpu.matmul %0, %33, %cst_25 {dimension_numbers = #tpu.dot_dimension_numbers<[1], [0], [0], [1], [0, 0, 1, 1], [], []>} : vector<16x16xbf16>, vector<16x128xbf16>, vector<16x128xf32> -> vector<16x128xf32>
    %35 = arith.truncf %34 : vector<16x128xf32> to vector<16x128xbf16>
    %c2_26 = arith.constant 2 : index
    %c0_27 = arith.constant 0 : index
    %c0_28 = arith.constant 0 : index
    %36 = vector.load %arg4[%c2_26, %c0_27, %c0_28] : memref<4x1x128xf32, #tpu.memory_space<vmem>>, vector<1x1x128xf32>
    %37 = vector.shape_cast %36 : vector<1x1x128xf32> to vector<1x128xf32>
    %c4 = arith.constant 4 : index
    %c0_29 = arith.constant 0 : index
    %c0_30 = arith.constant 0 : index
    %38 = vector.load %arg3[%c4, %c0_29, %c0_30] : memref<6x128x128xbf16, #tpu.memory_space<vmem>>, vector<1x128x128xbf16>
    %39 = vector.shape_cast %38 : vector<1x128x128xbf16> to vector<128x128xbf16>
    %cst_31 = arith.constant dense<0.000000e+00> : vector<16x128xf32>
    %40 = tpu.matmul %35, %39, %cst_31 {dimension_numbers = #tpu.dot_dimension_numbers<[1], [0], [0], [1], [0, 0, 1, 1], [], []>} : vector<16x128xbf16>, vector<128x128xbf16>, vector<16x128xf32> -> vector<16x128xf32>
    %c5 = arith.constant 5 : index
    %c0_32 = arith.constant 0 : index
    %c0_33 = arith.constant 0 : index
    %41 = vector.load %arg3[%c5, %c0_32, %c0_33] : memref<6x128x128xbf16, #tpu.memory_space<vmem>>, vector<1x128x128xbf16>
    %42 = vector.shape_cast %41 : vector<1x128x128xbf16> to vector<128x128xbf16>
    %cst_34 = arith.constant dense<0.000000e+00> : vector<16x128xf32>
    %43 = tpu.matmul %33, %42, %cst_34 {dimension_numbers = #tpu.dot_dimension_numbers<[1], [0], [0], [1], [0, 0, 1, 1], [], []>} : vector<16x128xbf16>, vector<128x128xbf16>, vector<16x128xf32> -> vector<16x128xf32>
    %44 = arith.addf %40, %43 : vector<16x128xf32>
    %45 = vector.broadcast %37 : vector<1x128xf32> to vector<16x128xf32>
    %46 = arith.addf %44, %45 : vector<16x128xf32>
    %cst_35 = arith.constant 0.000000e+00 : f32
    %47 = vector.broadcast %cst_35 : f32 to vector<16x128xf32>
    %48 = arith.maximumf %46, %47 : vector<16x128xf32>
    %49 = arith.truncf %48 : vector<16x128xf32> to vector<16x128xbf16>
    %c0_36 = arith.constant 0 : index
    %c0_37 = arith.constant 0 : index
    %50 = vector.load %arg1[%c0_36, %c0_37] : memref<8x16xbf16, #tpu.memory_space<vmem>>, vector<8x16xbf16>
    %cst_38 = arith.constant dense<0.000000e+00> : vector<8x128xf32>
    %51 = tpu.matmul %50, %49, %cst_38 {dimension_numbers = #tpu.dot_dimension_numbers<[1], [0], [0], [1], [0, 0, 1, 1], [], []>} : vector<8x16xbf16>, vector<16x128xbf16>, vector<8x128xf32> -> vector<8x128xf32>
    %c0_39 = arith.constant 0 : index
    %c0_40 = arith.constant 0 : index
    %52 = vector.load %arg6[%c0_39, %c0_40] : memref<8x128xf32, #tpu.memory_space<vmem>>, vector<8x128xf32>
    tpu.vector_store %arg6[%c0_39, %c0_40], %51 {strides = array<i32>} : memref<8x128xf32, #tpu.memory_space<vmem>>, vector<8x128xf32>,
    %53 = arith.truncf %51 : vector<8x128xf32> to vector<8x128xbf16>
    %c0_41 = arith.constant 0 : index
    %c0_42 = arith.constant 0 : index
    %54 = vector.load %arg5[%c0_41, %c0_42] : memref<128x128xbf16, #tpu.memory_space<vmem>>, vector<128x128xbf16>
    %cst_43 = arith.constant dense<0.000000e+00> : vector<8x128xf32>
    %55 = tpu.matmul %53, %54, %cst_43 {dimension_numbers = #tpu.dot_dimension_numbers<[1], [0], [0], [1], [0, 0, 1, 1], [], []>} : vector<8x128xbf16>, vector<128x128xbf16>, vector<8x128xf32> -> vector<8x128xf32>
    %c3_44 = arith.constant 3 : index
    %c0_45 = arith.constant 0 : index
    %c0_46 = arith.constant 0 : index
    %56 = vector.load %arg4[%c3_44, %c0_45, %c0_46] : memref<4x1x128xf32, #tpu.memory_space<vmem>>, vector<1x1x128xf32>
    %57 = vector.shape_cast %56 : vector<1x1x128xf32> to vector<1x128xf32>
    %58 = vector.broadcast %57 : vector<1x128xf32> to vector<8x128xf32>
    %59 = arith.addf %55, %58 : vector<8x128xf32>
    %c0_47 = arith.constant 0 : index
    %c0_48 = arith.constant 0 : index
    %60 = vector.load %arg7[%c0_47, %c0_48] : memref<8x128xf32, #tpu.memory_space<vmem>>, vector<8x128xf32>
    tpu.vector_store %arg7[%c0_47, %c0_48], %59 {strides = array<i32>} : memref<8x128xf32, #tpu.memory_space<vmem>>, vector<8x128xf32>,
    return
  }
}

</mosaic_0001>

<llo_original>
// kernel: sage_model_forward.1
$region0: #{sage_model_forward.1}
  #allocation0 [shape = 'u32[]', space=smem, size = 0x4, offset = 0x4, fixed_abs, tag = 'smem constant byte address 0x4 - core index']
  #allocation1 [shape = 'u32[144,128]{1,0:T(1,128)}', space=vmem, size = 0x12000, scoped, tag = 'internal scratch']
  %s0 = inlined_call_operand.vmem [shape: bf16[16,16], index: 0, kind: input, shape index: {}]
  %s1 = inlined_call_operand.vmem [shape: bf16[8,16], index: 1, kind: input, shape index: {}]
  %s2 = inlined_call_operand.vmem [shape: bf16[16,128], index: 2, kind: input, shape index: {}]
  %s3 = inlined_call_operand.vmem [shape: bf16[6,128,128], index: 3, kind: input, shape index: {}]
  %s4 = inlined_call_operand.vmem [shape: f32[4,1,128], index: 4, kind: input, shape index: {}]
  %s5 = inlined_call_operand.vmem [shape: bf16[128,128], index: 5, kind: input, shape index: {}]
  %s6 = inlined_call_operand.hbm [shape: f32[8,128], index: 6, kind: output, shape index: {0}]
  %s7 = inlined_call_operand.vmem [shape: f32[8,128], index: 7, kind: output, shape index: {1}]
  %8 = xla_tuple %s6, %s7
  %s9 = sld [smem:[#allocation0]]
  $region42: #{sage_model_forward.1} parent=0
    _
  %s11 = ssub.s32 1, %s9
  %s12 = scalar_select 0, %s11, %s9
  $region1: #{sage_model_forward.1} parent=0
    #allocation2 [shape = 'u8[4096]{0}', space=vmem, size = 0x1000, scoped, tag = 'output window, operand 0, single buffered']
    #allocation3 [shape = 's32[1]{0}', space=sflag, size = 0x4, scoped, tag = 'scoped memory for sage_model_forward.1']
    %13 = vsyncpa [#allocation3], 0
    // Predicated region
    $region2: #{sage_model_forward.1} parent=1 // pred_check
      _
    $region3: #{sage_model_forward.1} parent=1 // pred_check_branch
      %15 = sbr.rel (0) target = $region5
    $region4: #{sage_model_forward.1} parent=1 // pred_region
      _
    $region5: #{sage_model_forward.1} parent=1 // pred_fallthru
      _
    // Predicated region
    $region6: #{sage_model_forward.1} parent=1 // pred_check
      _
    $region7: #{sage_model_forward.1} parent=1 // pred_check_branch
      %17 = sbr.rel (0) target = $region9
    $region8: #{sage_model_forward.1} parent=1 // pred_region
      _
    $region9: #{sage_model_forward.1} parent=1 // pred_fallthru
      _
    // Predicated region
    $region10: #{sage_model_forward.1} parent=1 // pred_check
      _
    $region11: #{sage_model_forward.1} parent=1 // pred_check_branch
      %19 = sbr.rel (0) target = $region13
    $region12: #{sage_model_forward.1} parent=1 // pred_region
      _
    $region13: #{sage_model_forward.1} parent=1 // pred_fallthru
      _
    // Predicated region
    $region14: #{sage_model_forward.1} parent=1 // pred_check
      _
    $region15: #{sage_model_forward.1} parent=1 // pred_check_branch
      %21 = sbr.rel (0) target = $region17
    $region16: #{sage_model_forward.1} parent=1 // pred_region
      _
    $region17: #{sage_model_forward.1} parent=1 // pred_fallthru
      _
    // Predicated region
    $region18: #{sage_model_forward.1} parent=1 // pred_check
      _
    $region19: #{sage_model_forward.1} parent=1 // pred_check_branch
      %23 = sbr.rel (0) target = $region21
    $region20: #{sage_model_forward.1} parent=1 // pred_region
      _
    $region21: #{sage_model_forward.1} parent=1 // pred_fallthru
      _
    // Predicated region
    $region22: #{sage_model_forward.1} parent=1 // pred_check
      _
    $region23: #{sage_model_forward.1} parent=1 // pred_check_branch
      %25 = sbr.rel (0) target = $region25
    $region24: #{sage_model_forward.1} parent=1 // pred_region
      _
    $region25: #{sage_model_forward.1} parent=1 // pred_fallthru
      _
    %v27 = vld [vmem:[%s0] sm:$0xf]
    %v28 = vld [vmem:[%s0 + $0x4] sm:$0xf]
    %v29 = vld [vmem:[%s2] sm:$0xf]
    %v30 = vld [vmem:[%s2 + $0x4] sm:$0xf]
    %v33 = vunpack.c.l.b16 %v27
    %v34 = vunpack.c.l.b16 %v28
    %v35 = vpack.c.b16 %v34, %v33
    %v38 = vunpack.c.l.b16 %v29
    %v39 = vunpack.c.l.b16 %v30
    %v40 = vpack.c.b16 %v39, %v38
    %vm42 = vcmask 130048
    %v44 = vsel %vm42, %v35, 0
    %46 = vmatprep.subr.bf16.mxu0 0
    %47 = vmatpush1.bf16.msra.mxu0 0
    %48 = vmatprep.subr.bf16.mxu0 0
    %49 = vmatpush1.bf16.msra.mxu0 0
    %50 = vmatprep.subr.bf16.mxu0 0
    %51 = vmatpush1.bf16.msra.mxu0 0
    %52 = vmatprep.subr.bf16.mxu0 0
    %53 = vmatpush1.bf16.msra.mxu0 0
    %54 = vmatprep.subr.bf16.mxu0 0
    %55 = vmatpush1.bf16.msra.mxu0 0
    %56 = vmatprep.subr.bf16.mxu0 0
    %57 = vmatpush1.bf16.msra.mxu0 0
    %58 = vmatprep.subr.bf16.mxu0 0
    %59 = vmatpush1.bf16.msra.mxu0 0
    %60 = vmatprep.subr.bf16.mxu0 0
    %61 = vmatpush1.bf16.msra.mxu0 %v40
    %62 = vmatprep.subr.bf16.mxu0 0
    %63 = vmatpush2.bf16.msra.mxu0 0
    %64 = vmatprep.subr.bf16.mxu0 0
    %65 = vmatpush2.bf16.msra.mxu0 0
    %66 = vmatprep.subr.bf16.mxu0 0
    %67 = vmatpush2.bf16.msra.mxu0 0
    %68 = vmatprep.subr.bf16.mxu0 0
    %69 = vmatpush2.bf16.msra.mxu0 0
    %70 = vmatprep.subr.bf16.mxu0 0
    %71 = vmatpush2.bf16.msra.mxu0 0
    %72 = vmatprep.subr.bf16.mxu0 0
    %73 = vmatpush2.bf16.msra.mxu0 0
    %74 = vmatprep.subr.bf16.mxu0 0
    %75 = vmatpush2.bf16.msra.mxu0 0
    %76 = vmatprep.subr.bf16.mxu0 0
    %77 = vmatpush2.bf16.msra.mxu0 0
    %78 = vmatprep.mubr.bf16.mxu0 0
    %79 = vmatmul.mubr.bf16.gmra.mxu0 %v44
    %v80 = vpop.f32.mrf.mxu0
    %v81 = vadd.f32 0.0, %v80
    %v82 = vpop.f32.mrf.mxu0
    %v83 = vpop.f32.mrf.mxu0
    %v84 = vadd.f32 0.0, %v83
    %v85 = vpop.f32.mrf.mxu0
    %86 = vdwg.mxu0
    %v87 = vpack.c.bf16 %v84, %v81
    %v88 = vld [vmem:[%s4] sm:$0x1]
    %v89 = vld [vmem:[%s3] sm:$0xf]
    %v90 = vld [vmem:[%s3 + $0x4] sm:$0xf]
    %v91 = vld [vmem:[%s3 + $0x8] sm:$0xf]
    %v92 = vld [vmem:[%s3 + $0xc] sm:$0xf]
    %v93 = vld [vmem:[%s3 + $0x10] sm:$0xf]
    %v94 = vld [vmem:[%s3 + $0x14] sm:$0xf]
    %v95 = vld [vmem:[%s3 + $0x18] sm:$0xf]
    %v96 = vld [vmem:[%s3 + $0x1c] sm:$0xf]
    %v97 = vld [vmem:[%s3 + $0x20] sm:$0xf]
    %v98 = vld [vmem:[%s3 + $0x24] sm:$0xf]
    %v99 = vld [vmem:[%s3 + $0x28] sm:$0xf]
    %v100 = vld [vmem:[%s3 + $0x2c] sm:$0xf]
    %v101 = vld [vmem:[%s3 + $0x30] sm:$0xf]
    %v102 = vld [vmem:[%s3 + $0x34] sm:$0xf]
    %v103 = vld [vmem:[%s3 + $0x38] sm:$0xf]
    %v104 = vld [vmem:[%s3 + $0x3c] sm:$0xf]
    %s105 = scalar_lea.vmem %s3, 64
    %v106 = vld [vmem:[%s105] sm:$0xf]
    %v107 = vld [vmem:[%s105 + $0x4] sm:$0xf]
    %v108 = vld [vmem:[%s105 + $0x8] sm:$0xf]
    %v109 = vld [vmem:[%s105 + $0xc] sm:$0xf]
    %v110 = vld [vmem:[%s105 + $0x10] sm:$0xf]
    %v111 = vld [vmem:[%s105 + $0x14] sm:$0xf]
    %v112 = vld [vmem:[%s105 + $0x18] sm:$0xf]
    %v113 = vld [vmem:[%s105 + $0x1c] sm:$0xf]
    %v114 = vld [vmem:[%s105 + $0x20] sm:$0xf]
    %v115 = vld [vmem:[%s105 + $0x24] sm:$0xf]
    %v116 = vld [vmem:[%s105 + $0x28] sm:$0xf]
    %v117 = vld [vmem:[%s105 + $0x2c] sm:$0xf]
    %v118 = vld [vmem:[%s105 + $0x30] sm:$0xf]
    %v119 = vld [vmem:[%s105 + $0x34] sm:$0xf]
    %v120 = vld [vmem:[%s105 + $0x38] sm:$0xf]
    %v121 = vld [vmem:[%s105 + $0x3c] sm:$0xf]
    %v138 = vunpack.c.l.b16 %v106
    %v139 = vunpack.c.l.b16 %v107
    %v140 = vunpack.c.l.b16 %v108
    %v141 = vunpack.c.l.b16 %v109
    %v142 = vunpack.c.l.b16 %v110
    %v143 = vunpack.c.l.b16 %v111
    %v144 = vunpack.c.l.b16 %v112
    %v145 = vunpack.c.l.b16 %v113
    %v146 = vunpack.c.l.b16 %v114
    %v147 = vunpack.c.l.b16 %v115
    %v148 = vunpack.c.l.b16 %v116
    %v149 = vunpack.c.l.b16 %v117
    %v150 = vunpack.c.l.b16 %v118
    %v151 = vunpack.c.l.b16 %v119
    %v152 = vunpack.c.l.b16 %v120
    %v153 = vunpack.c.l.b16 %v121
    %v154 = vpack.c.b16 %v139, %v138
    %v155 = vpack.c.b16 %v141, %v140
    %v156 = vpack.c.b16 %v143, %v142
    %v157 = vpack.c.b16 %v145, %v144
    %v158 = vpack.c.b16 %v147, %v146
    %v159 = vpack.c.b16 %v149, %v148
    %v160 = vpack.c.b16 %v151, %v150
    %v161 = vpack.c.b16 %v153, %v152
    %170 = vmatprep.subr.bf16.mxu0 0
    %171 = vmatpush1.bf16.msra.mxu0 %v161
    %172 = vmatprep.subr.bf16.mxu0 0
    %173 = vmatpush1.bf16.msra.mxu0 %v160
    %174 = vmatprep.subr.bf16.mxu0 0
    %175 = vmatpush1.bf16.msra.mxu0 %v159
    %176 = vmatprep.subr.bf16.mxu0 0
    %177 = vmatpush1.bf16.msra.mxu0 %v158
    %178 = vmatprep.subr.bf16.mxu0 0
    %179 = vmatpush1.bf16.msra.mxu0 %v157
    %180 = vmatprep.subr.bf16.mxu0 0
    %181 = vmatpush1.bf16.msra.mxu0 %v156
    %182 = vmatprep.subr.bf16.mxu0 0
    %183 = vmatpush1.bf16.msra.mxu0 %v155
    %184 = vmatprep.subr.bf16.mxu0 0
    %185 = vmatpush1.bf16.msra.mxu0 %v154
    %186 = vmatprep.subr.bf16.mxu0 0
    %187 = vmatpush2.bf16.msra.mxu0 0
    %188 = vmatprep.subr.bf16.mxu0 0
    %189 = vmatpush2.bf16.msra.mxu0 0
    %190 = vmatprep.subr.bf16.mxu0 0
    %191 = vmatpush2.bf16.msra.mxu0 0
    %192 = vmatprep.subr.bf16.mxu0 0
    %193 = vmatpush2.bf16.msra.mxu0 0
    %194 = vmatprep.subr.bf16.mxu0 0
    %195 = vmatpush2.bf16.msra.mxu0 0
    %196 = vmatprep.subr.bf16.mxu0 0
    %197 = vmatpush2.bf16.msra.mxu0 0
    %198 = vmatprep.subr.bf16.mxu0 0
    %199 = vmatpush2.bf16.msra.mxu0 0
    %200 = vmatprep.subr.bf16.mxu0 0
    %201 = vmatpush2.bf16.msra.mxu0 0
    %202 = vmatprep.mubr.bf16.mxu0 0
    %203 = vmatmul.mubr.bf16.gmra.mxu0 %v40
    %v204 = vpop.f32.mrf.mxu0
    %v205 = vadd.f32 0.0, %v204
    %v206 = vpop.f32.mrf.mxu0
    %v207 = vpop.f32.mrf.mxu0
    %v208 = vadd.f32 0.0, %v207
    %v209 = vpop.f32.mrf.mxu0
    %210 = vdwg.mxu0
    %v227 = vunpack.c.l.b16 %v89
    %v228 = vunpack.c.l.b16 %v90
    %v229 = vunpack.c.l.b16 %v91
    %v230 = vunpack.c.l.b16 %v92
    %v231 = vunpack.c.l.b16 %v93
    %v232 = vunpack.c.l.b16 %v94
    %v233 = vunpack.c.l.b16 %v95
    %v234 = vunpack.c.l.b16 %v96
    %v235 = vunpack.c.l.b16 %v97
    %v236 = vunpack.c.l.b16 %v98
    %v237 = vunpack.c.l.b16 %v99
    %v238 = vunpack.c.l.b16 %v100
    %v239 = vunpack.c.l.b16 %v101
    %v240 = vunpack.c.l.b16 %v102
    %v241 = vunpack.c.l.b16 %v103
    %v242 = vunpack.c.l.b16 %v104
    %v243 = vpack.c.b16 %v228, %v227
    %v244 = vpack.c.b16 %v230, %v229
    %v245 = vpack.c.b16 %v232, %v231
    %v246 = vpack.c.b16 %v234, %v233
    %v247 = vpack.c.b16 %v236, %v235
    %v248 = vpack.c.b16 %v238, %v237
    %v249 = vpack.c.b16 %v240, %v239
    %v250 = vpack.c.b16 %v242, %v241
    %259 = vmatprep.subr.bf16.mxu0 0
    %260 = vmatpush1.bf16.msra.mxu0 %v250
    %261 = vmatprep.subr.bf16.mxu0 0
    %262 = vmatpush1.bf16.msra.mxu0 %v249
    %263 = vmatprep.subr.bf16.mxu0 0
    %264 = vmatpush1.bf16.msra.mxu0 %v248
    %265 = vmatprep.subr.bf16.mxu0 0
    %266 = vmatpush1.bf16.msra.mxu0 %v247
    %267 = vmatprep.subr.bf16.mxu0 0
    %268 = vmatpush1.bf16.msra.mxu0 %v246
    %269 = vmatprep.subr.bf16.mxu0 0
    %270 = vmatpush1.bf16.msra.mxu0 %v245
    %271 = vmatprep.subr.bf16.mxu0 0
    %272 = vmatpush1.bf16.msra.mxu0 %v244
    %273 = vmatprep.subr.bf16.mxu0 0
    %274 = vmatpush1.bf16.msra.mxu0 %v243
    %275 = vmatprep.subr.bf16.mxu0 0
    %276 = vmatpush2.bf16.msra.mxu0 0
    %277 = vmatprep.subr.bf16.mxu0 0
    %278 = vmatpush2.bf16.msra.mxu0 0
    %279 = vmatprep.subr.bf16.mxu0 0
    %280 = vmatpush2.bf16.msra.mxu0 0
    %281 = vmatprep.subr.bf16.mxu0 0
    %282 = vmatpush2.bf16.msra.mxu0 0
    %283 = vmatprep.subr.bf16.mxu0 0
    %284 = vmatpush2.bf16.msra.mxu0 0
    %285 = vmatprep.subr.bf16.mxu0 0
    %286 = vmatpush2.bf16.msra.mxu0 0
    %287 = vmatprep.subr.bf16.mxu0 0
    %288 = vmatpush2.bf16.msra.mxu0 0
    %289 = vmatprep.subr.bf16.mxu0 0
    %290 = vmatpush2.bf16.msra.mxu0 0
    %291 = vmatprep.mubr.bf16.mxu0 0
    %292 = vmatmul.mubr.bf16.gmra.mxu0 %v87
    %v293 = vpop.f32.mrf.mxu0
    %v294 = vadd.f32 %v205, %v293
    %v295 = vpop.f32.mrf.mxu0
    %v296 = vpop.f32.mrf.mxu0
    %v297 = vadd.f32 %v208, %v296
    %v298 = vpop.f32.mrf.mxu0
    %299 = vdwg.mxu0
    %v301 = vlaneseq
    %v302 = vshrl.u32 %v301, 7
    %v303 = vsub.s32 0, %v302
    %v304 = vrot.slane %v88, %v303
    %v306 = vadd.f32 %v294, %v304
    %v307 = vadd.f32 %v297, %v304
    %v308 = vmax.f32 %v306, 0.0
    %v309 = vmax.f32 %v307, 0.0
    %v310 = vpack.c.bf16 %v309, %v308
    %311 = vmatprep.subr.bf16.mxu0 0
    %312 = vmatpush1.bf16.msra.mxu0 0
    %313 = vmatprep.subr.bf16.mxu0 0
    %314 = vmatpush1.bf16.msra.mxu0 0
    %315 = vmatprep.subr.bf16.mxu0 0
    %316 = vmatpush1.bf16.msra.mxu0 0
    %317 = vmatprep.subr.bf16.mxu0 0
    %318 = vmatpush1.bf16.msra.mxu0 0
    %319 = vmatprep.subr.bf16.mxu0 0
    %320 = vmatpush1.bf16.msra.mxu0 0
    %321 = vmatprep.subr.bf16.mxu0 0
    %322 = vmatpush1.bf16.msra.mxu0 0
    %323 = vmatprep.subr.bf16.mxu0 0
    %324 = vmatpush1.bf16.msra.mxu0 0
    %325 = vmatprep.subr.bf16.mxu0 0
    %326 = vmatpush1.bf16.msra.mxu0 %v310
    %327 = vmatprep.subr.bf16.mxu0 0
    %328 = vmatpush2.bf16.msra.mxu0 0
    %329 = vmatprep.subr.bf16.mxu0 0
    %330 = vmatpush2.bf16.msra.mxu0 0
    %331 = vmatprep.subr.bf16.mxu0 0
    %332 = vmatpush2.bf16.msra.mxu0 0
    %333 = vmatprep.subr.bf16.mxu0 0
    %334 = vmatpush2.bf16.msra.mxu0 0
    %335 = vmatprep.subr.bf16.mxu0 0
    %336 = vmatpush2.bf16.msra.mxu0 0
    %337 = vmatprep.subr.bf16.mxu0 0
    %338 = vmatpush2.bf16.msra.mxu0 0
    %339 = vmatprep.subr.bf16.mxu0 0
    %340 = vmatpush2.bf16.msra.mxu0 0
    %341 = vmatprep.subr.bf16.mxu0 0
    %342 = vmatpush2.bf16.msra.mxu0 0
    %343 = vmatprep.mubr.bf16.mxu0 0
    %344 = vmatmul.mubr.bf16.gmra.mxu0 %v44
    %v345 = vpop.f32.mrf.mxu0
    %v346 = vadd.f32 0.0, %v345
    %v347 = vpop.f32.mrf.mxu0
    %v348 = vpop.f32.mrf.mxu0
    %v349 = vadd.f32 0.0, %v348
    %v350 = vpop.f32.mrf.mxu0
    %351 = vdwg.mxu0
    %v352 = vpack.c.bf16 %v349, %v346
    %s353 = scalar_lea.vmem %s4, 1
    %v354 = vld [vmem:[%s353] sm:$0x1]
    %s355 = scalar_lea.vmem %s3, 128
    %v356 = vld [vmem:[%s355] sm:$0xf]
    %v357 = vld [vmem:[%s355 + $0x4] sm:$0xf]
    %v358 = vld [vmem:[%s355 + $0x8] sm:$0xf]
    %v359 = vld [vmem:[%s355 + $0xc] sm:$0xf]
    %v360 = vld [vmem:[%s355 + $0x10] sm:$0xf]
    %v361 = vld [vmem:[%s355 + $0x14] sm:$0xf]
    %v362 = vld [vmem:[%s355 + $0x18] sm:$0xf]
    %v363 = vld [vmem:[%s355 + $0x1c] sm:$0xf]
    %v364 = vld [vmem:[%s355 + $0x20] sm:$0xf]
    %v365 = vld [vmem:[%s355 + $0x24] sm:$0xf]
    %v366 = vld [vmem:[%s355 + $0x28] sm:$0xf]
    %v367 = vld [vmem:[%s355 + $0x2c] sm:$0xf]
    %v368 = vld [vmem:[%s355 + $0x30] sm:$0xf]
    %v369 = vld [vmem:[%s355 + $0x34] sm:$0xf]
    %v370 = vld [vmem:[%s355 + $0x38] sm:$0xf]
    %v371 = vld [vmem:[%s355 + $0x3c] sm:$0xf]
    %s372 = scalar_lea.vmem %s3, 192
    %v373 = vld [vmem:[%s372] sm:$0xf]
    %v374 = vld [vmem:[%s372 + $0x4] sm:$0xf]
    %v375 = vld [vmem:[%s372 + $0x8] sm:$0xf]
    %v376 = vld [vmem:[%s372 + $0xc] sm:$0xf]
    %v377 = vld [vmem:[%s372 + $0x10] sm:$0xf]
    %v378 = vld [vmem:[%s372 + $0x14] sm:$0xf]
    %v379 = vld [vmem:[%s372 + $0x18] sm:$0xf]
    %v380 = vld [vmem:[%s372 + $0x1c] sm:$0xf]
    %v381 = vld [vmem:[%s372 + $0x20] sm:$0xf]
    %v382 = vld [vmem:[%s372 + $0x24] sm:$0xf]
    %v383 = vld [vmem:[%s372 + $0x28] sm:$0xf]
    %v384 = vld [vmem:[%s372 + $0x2c] sm:$0xf]
    %v385 = vld [vmem:[%s372 + $0x30] sm:$0xf]
    %v386 = vld [vmem:[%s372 + $0x34] sm:$0xf]
    %v387 = vld [vmem:[%s372 + $0x38] sm:$0xf]
    %v388 = vld [vmem:[%s372 + $0x3c] sm:$0xf]
    %v405 = vunpack.c.l.b16 %v373
    %v406 = vunpack.c.l.b16 %v374
    %v407 = vunpack.c.l.b16 %v375
    %v408 = vunpack.c.l.b16 %v376
    %v409 = vunpack.c.l.b16 %v377
    %v410 = vunpack.c.l.b16 %v378
    %v411 = vunpack.c.l.b16 %v379
    %v412 = vunpack.c.l.b16 %v380
    %v413 = vunpack.c.l.b16 %v381
    %v414 = vunpack.c.l.b16 %v382
    %v415 = vunpack.c.l.b16 %v383
    %v416 = vunpack.c.l.b16 %v384
    %v417 = vunpack.c.l.b16 %v385
    %v418 = vunpack.c.l.b16 %v386
    %v419 = vunpack.c.l.b16 %v387
    %v420 = vunpack.c.l.b16 %v388
    %v421 = vpack.c.b16 %v406, %v405
    %v422 = vpack.c.b16 %v408, %v407
    %v423 = vpack.c.b16 %v410, %v409
    %v424 = vpack.c.b16 %v412, %v411
    %v425 = vpack.c.b16 %v414, %v413
    %v426 = vpack.c.b16 %v416, %v415
    %v427 = vpack.c.b16 %v418, %v417
    %v428 = vpack.c.b16 %v420, %v419
    %437 = vmatprep.subr.bf16.mxu0 0
    %438 = vmatpush1.bf16.msra.mxu0 %v428
    %439 = vmatprep.subr.bf16.mxu0 0
    %440 = vmatpush1.bf16.msra.mxu0 %v427
    %441 = vmatprep.subr.bf16.mxu0 0
    %442 = vmatpush1.bf16.msra.mxu0 %v426
    %443 = vmatprep.subr.bf16.mxu0 0
    %444 = vmatpush1.bf16.msra.mxu0 %v425
    %445 = vmatprep.subr.bf16.mxu0 0
    %446 = vmatpush1.bf16.msra.mxu0 %v424
    %447 = vmatprep.subr.bf16.mxu0 0
    %448 = vmatpush1.bf16.msra.mxu0 %v423
    %449 = vmatprep.subr.bf16.mxu0 0
    %450 = vmatpush1.bf16.msra.mxu0 %v422
    %451 = vmatprep.subr.bf16.mxu0 0
    %452 = vmatpush1.bf16.msra.mxu0 %v421
    %453 = vmatprep.subr.bf16.mxu0 0
    %454 = vmatpush2.bf16.msra.mxu0 0
    %455 = vmatprep.subr.bf16.mxu0 0
    %456 = vmatpush2.bf16.msra.mxu0 0
    %457 = vmatprep.subr.bf16.mxu0 0
    %458 = vmatpush2.bf16.msra.mxu0 0
    %459 = vmatprep.subr.bf16.mxu0 0
    %460 = vmatpush2.bf16.msra.mxu0 0
    %461 = vmatprep.subr.bf16.mxu0 0
    %462 = vmatpush2.bf16.msra.mxu0 0
    %463 = vmatprep.subr.bf16.mxu0 0
    %464 = vmatpush2.bf16.msra.mxu0 0
    %465 = vmatprep.subr.bf16.mxu0 0
    %466 = vmatpush2.bf16.msra.mxu0 0
    %467 = vmatprep.subr.bf16.mxu0 0
    %468 = vmatpush2.bf16.msra.mxu0 0
    %469 = vmatprep.mubr.bf16.mxu0 0
    %470 = vmatmul.mubr.bf16.gmra.mxu0 %v310
    %v471 = vpop.f32.mrf.mxu0
    %v472 = vadd.f32 0.0, %v471
    %v473 = vpop.f32.mrf.mxu0
    %v474 = vpop.f32.mrf.mxu0
    %v475 = vadd.f32 0.0, %v474
    %v476 = vpop.f32.mrf.mxu0
    %477 = vdwg.mxu0
    %v494 = vunpack.c.l.b16 %v356
    %v495 = vunpack.c.l.b16 %v357
    %v496 = vunpack.c.l.b16 %v358
    %v497 = vunpack.c.l.b16 %v359
    %v498 = vunpack.c.l.b16 %v360
    %v499 = vunpack.c.l.b16 %v361
    %v500 = vunpack.c.l.b16 %v362
    %v501 = vunpack.c.l.b16 %v363
    %v502 = vunpack.c.l.b16 %v364
    %v503 = vunpack.c.l.b16 %v365
    %v504 = vunpack.c.l.b16 %v366
    %v505 = vunpack.c.l.b16 %v367
    %v506 = vunpack.c.l.b16 %v368
    %v507 = vunpack.c.l.b16 %v369
    %v508 = vunpack.c.l.b16 %v370
    %v509 = vunpack.c.l.b16 %v371
    %v510 = vpack.c.b16 %v495, %v494
    %v511 = vpack.c.b16 %v497, %v496
    %v512 = vpack.c.b16 %v499, %v498
    %v513 = vpack.c.b16 %v501, %v500
    %v514 = vpack.c.b16 %v503, %v502
    %v515 = vpack.c.b16 %v505, %v504
    %v516 = vpack.c.b16 %v507, %v506
    %v517 = vpack.c.b16 %v509, %v508
    %526 = vmatprep.subr.bf16.mxu0 0
    %527 = vmatpush1.bf16.msra.mxu0 %v517
    %528 = vmatprep.subr.bf16.mxu0 0
    %529 = vmatpush1.bf16.msra.mxu0 %v516
    %530 = vmatprep.subr.bf16.mxu0 0
    %531 = vmatpush1.bf16.msra.mxu0 %v515
    %532 = vmatprep.subr.bf16.mxu0 0
    %533 = vmatpush1.bf16.msra.mxu0 %v514
    %534 = vmatprep.subr.bf16.mxu0 0
    %535 = vmatpush1.bf16.msra.mxu0 %v513
    %536 = vmatprep.subr.bf16.mxu0 0
    %537 = vmatpush1.bf16.msra.mxu0 %v512
    %538 = vmatprep.subr.bf16.mxu0 0
    %539 = vmatpush1.bf16.msra.mxu0 %v511
    %540 = vmatprep.subr.bf16.mxu0 0
    %541 = vmatpush1.bf16.msra.mxu0 %v510
    %542 = vmatprep.subr.bf16.mxu0 0
    %543 = vmatpush2.bf16.msra.mxu0 0
    %544 = vmatprep.subr.bf16.mxu0 0
    %545 = vmatpush2.bf16.msra.mxu0 0
    %546 = vmatprep.subr.bf16.mxu0 0
    %547 = vmatpush2.bf16.msra.mxu0 0
    %548 = vmatprep.subr.bf16.mxu0 0
    %549 = vmatpush2.bf16.msra.mxu0 0
    %550 = vmatprep.subr.bf16.mxu0 0
    %551 = vmatpush2.bf16.msra.mxu0 0
    %552 = vmatprep.subr.bf16.mxu0 0
    %553 = vmatpush2.bf16.msra.mxu0 0
    %554 = vmatprep.subr.bf16.mxu0 0
    %555 = vmatpush2.bf16.msra.mxu0 0
    %556 = vmatprep.subr.bf16.mxu0 0
    %557 = vmatpush2.bf16.msra.mxu0 0
    %558 = vmatprep.mubr.bf16.mxu0 0
    %559 = vmatmul.mubr.bf16.gmra.mxu0 %v352
    %v560 = vpop.f32.mrf.mxu0
    %v561 = vadd.f32 %v472, %v560
    %v562 = vpop.f32.mrf.mxu0
    %v563 = vpop.f32.mrf.mxu0
    %v564 = vadd.f32 %v475, %v563
    %v565 = vpop.f32.mrf.mxu0
    %566 = vdwg.mxu0
    %v568 = vlaneseq
    %v569 = vshrl.u32 %v568, 7
    %v570 = vsub.s32 0, %v569
    %v571 = vrot.slane %v354, %v570
    %v573 = vadd.f32 %v561, %v571
    %v574 = vadd.f32 %v564, %v571
    %v575 = vmax.f32 %v573, 0.0
    %v576 = vmax.f32 %v574, 0.0
    %v577 = vpack.c.bf16 %v576, %v575
    %578 = vmatprep.subr.bf16.mxu0 0
    %579 = vmatpush1.bf16.msra.mxu0 0
    %580 = vmatprep.subr.bf16.mxu0 0
    %581 = vmatpush1.bf16.msra.mxu0 0
    %582 = vmatprep.subr.bf16.mxu0 0
    %583 = vmatpush1.bf16.msra.mxu0 0
    %584 = vmatprep.subr.bf16.mxu0 0
    %585 = vmatpush1.bf16.msra.mxu0 0
    %586 = vmatprep.subr.bf16.mxu0 0
    %587 = vmatpush1.bf16.msra.mxu0 0
    %588 = vmatprep.subr.bf16.mxu0 0
    %589 = vmatpush1.bf16.msra.mxu0 0
    %590 = vmatprep.subr.bf16.mxu0 0
    %591 = vmatpush1.bf16.msra.mxu0 0
    %592 = vmatprep.subr.bf16.mxu0 0
    %593 = vmatpush1.bf16.msra.mxu0 %v577
    %594 = vmatprep.subr.bf16.mxu0 0
    %595 = vmatpush2.bf16.msra.mxu0 0
    %596 = vmatprep.subr.bf16.mxu0 0
    %597 = vmatpush2.bf16.msra.mxu0 0
    %598 = vmatprep.subr.bf16.mxu0 0
    %599 = vmatpush2.bf16.msra.mxu0 0
    %600 = vmatprep.subr.bf16.mxu0 0
    %601 = vmatpush2.bf16.msra.mxu0 0
    %602 = vmatprep.subr.bf16.mxu0 0
    %603 = vmatpush2.bf16.msra.mxu0 0
    %604 = vmatprep.subr.bf16.mxu0 0
    %605 = vmatpush2.bf16.msra.mxu0 0
    %606 = vmatprep.subr.bf16.mxu0 0
    %607 = vmatpush2.bf16.msra.mxu0 0
    %608 = vmatprep.subr.bf16.mxu0 0
    %609 = vmatpush2.bf16.msra.mxu0 0
    %610 = vmatprep.mubr.bf16.mxu0 0
    %611 = vmatmul.mubr.bf16.gmra.mxu0 %v44
    %v612 = vpop.f32.mrf.mxu0
    %v613 = vadd.f32 0.0, %v612
    %v614 = vpop.f32.mrf.mxu0
    %v615 = vpop.f32.mrf.mxu0
    %v616 = vadd.f32 0.0, %v615
    %v617 = vpop.f32.mrf.mxu0
    %618 = vdwg.mxu0
    %v619 = vpack.c.bf16 %v616, %v613
    %s620 = scalar_lea.vmem %s4, 2
    %v621 = vld [vmem:[%s620] sm:$0x1]
    %s622 = scalar_lea.vmem %s3, 256
    %v623 = vld [vmem:[%s622] sm:$0xf]
    %v624 = vld [vmem:[%s622 + $0x4] sm:$0xf]
    %v625 = vld [vmem:[%s622 + $0x8] sm:$0xf]
    %v626 = vld [vmem:[%s622 + $0xc] sm:$0xf]
    %v627 = vld [vmem:[%s622 + $0x10] sm:$0xf]
    %v628 = vld [vmem:[%s622 + $0x14] sm:$0xf]
    %v629 = vld [vmem:[%s622 + $0x18] sm:$0xf]
    %v630 = vld [vmem:[%s622 + $0x1c] sm:$0xf]
    %v631 = vld [vmem:[%s622 + $0x20] sm:$0xf]
    %v632 = vld [vmem:[%s622 + $0x24] sm:$0xf]
    %v633 = vld [vmem:[%s622 + $0x28] sm:$0xf]
    %v634 = vld [vmem:[%s622 + $0x2c] sm:$0xf]
    %v635 = vld [vmem:[%s622 + $0x30] sm:$0xf]
    %v636 = vld [vmem:[%s622 + $0x34] sm:$0xf]
    %v637 = vld [vmem:[%s622 + $0x38] sm:$0xf]
    %v638 = vld [vmem:[%s622 + $0x3c] sm:$0xf]
    %s639 = scalar_lea.vmem %s3, 320
    %v640 = vld [vmem:[%s639] sm:$0xf]
    %v641 = vld [vmem:[%s639 + $0x4] sm:$0xf]
    %v642 = vld [vmem:[%s639 + $0x8] sm:$0xf]
    %v643 = vld [vmem:[%s639 + $0xc] sm:$0xf]
    %v644 = vld [vmem:[%s639 + $0x10] sm:$0xf]
    %v645 = vld [vmem:[%s639 + $0x14] sm:$0xf]
    %v646 = vld [vmem:[%s639 + $0x18] sm:$0xf]
    %v647 = vld [vmem:[%s639 + $0x1c] sm:$0xf]
    %v648 = vld [vmem:[%s639 + $0x20] sm:$0xf]
    %v649 = vld [vmem:[%s639 + $0x24] sm:$0xf]
    %v650 = vld [vmem:[%s639 + $0x28] sm:$0xf]
    %v651 = vld [vmem:[%s639 + $0x2c] sm:$0xf]
    %v652 = vld [vmem:[%s639 + $0x30] sm:$0xf]
    %v653 = vld [vmem:[%s639 + $0x34] sm:$0xf]
    %v654 = vld [vmem:[%s639 + $0x38] sm:$0xf]
    %v655 = vld [vmem:[%s639 + $0x3c] sm:$0xf]
    %v672 = vunpack.c.l.b16 %v640
    %v673 = vunpack.c.l.b16 %v641
    %v674 = vunpack.c.l.b16 %v642
    %v675 = vunpack.c.l.b16 %v643
    %v676 = vunpack.c.l.b16 %v644
    %v677 = vunpack.c.l.b16 %v645
    %v678 = vunpack.c.l.b16 %v646
    %v679 = vunpack.c.l.b16 %v647
    %v680 = vunpack.c.l.b16 %v648
    %v681 = vunpack.c.l.b16 %v649
    %v682 = vunpack.c.l.b16 %v650
    %v683 = vunpack.c.l.b16 %v651
    %v684 = vunpack.c.l.b16 %v652
    %v685 = vunpack.c.l.b16 %v653
    %v686 = vunpack.c.l.b16 %v654
    %v687 = vunpack.c.l.b16 %v655
    %v688 = vpack.c.b16 %v673, %v672
    %v689 = vpack.c.b16 %v675, %v674
    %v690 = vpack.c.b16 %v677, %v676
    %v691 = vpack.c.b16 %v679, %v678
    %v692 = vpack.c.b16 %v681, %v680
    %v693 = vpack.c.b16 %v683, %v682
    %v694 = vpack.c.b16 %v685, %v684
    %v695 = vpack.c.b16 %v687, %v686
    %704 = vmatprep.subr.bf16.mxu0 0
    %705 = vmatpush1.bf16.msra.mxu0 %v695
    %706 = vmatprep.subr.bf16.mxu0 0
    %707 = vmatpush1.bf16.msra.mxu0 %v694
    %708 = vmatprep.subr.bf16.mxu0 0
    %709 = vmatpush1.bf16.msra.mxu0 %v693
    %710 = vmatprep.subr.bf16.mxu0 0
    %711 = vmatpush1.bf16.msra.mxu0 %v692
    %712 = vmatprep.subr.bf16.mxu0 0
    %713 = vmatpush1.bf16.msra.mxu0 %v691
    %714 = vmatprep.subr.bf16.mxu0 0
    %715 = vmatpush1.bf16.msra.mxu0 %v690
    %716 = vmatprep.subr.bf16.mxu0 0
    %717 = vmatpush1.bf16.msra.mxu0 %v689
    %718 = vmatprep.subr.bf16.mxu0 0
    %719 = vmatpush1.bf16.msra.mxu0 %v688
    %720 = vmatprep.subr.bf16.mxu0 0
    %721 = vmatpush2.bf16.msra.mxu0 0
    %722 = vmatprep.subr.bf16.mxu0 0
    %723 = vmatpush2.bf16.msra.mxu0 0
    %724 = vmatprep.subr.bf16.mxu0 0
    %725 = vmatpush2.bf16.msra.mxu0 0
    %726 = vmatprep.subr.bf16.mxu0 0
    %727 = vmatpush2.bf16.msra.mxu0 0
    %728 = vmatprep.subr.bf16.mxu0 0
    %729 = vmatpush2.bf16.msra.mxu0 0
    %730 = vmatprep.subr.bf16.mxu0 0
    %731 = vmatpush2.bf16.msra.mxu0 0
    %732 = vmatprep.subr.bf16.mxu0 0
    %733 = vmatpush2.bf16.msra.mxu0 0
    %734 = vmatprep.subr.bf16.mxu0 0
    %735 = vmatpush2.bf16.msra.mxu0 0
    %736 = vmatprep.mubr.bf16.mxu0 0
    %737 = vmatmul.mubr.bf16.gmra.mxu0 %v577
    %v738 = vpop.f32.mrf.mxu0
    %v739 = vadd.f32 0.0, %v738
    %v740 = vpop.f32.mrf.mxu0
    %v741 = vpop.f32.mrf.mxu0
    %v742 = vadd.f32 0.0, %v741
    %v743 = vpop.f32.mrf.mxu0
    %744 = vdwg.mxu0
    %v761 = vunpack.c.l.b16 %v623
    %v762 = vunpack.c.l.b16 %v624
    %v763 = vunpack.c.l.b16 %v625
    %v764 = vunpack.c.l.b16 %v626
    %v765 = vunpack.c.l.b16 %v627
    %v766 = vunpack.c.l.b16 %v628
    %v767 = vunpack.c.l.b16 %v629
    %v768 = vunpack.c.l.b16 %v630
    %v769 = vunpack.c.l.b16 %v631
    %v770 = vunpack.c.l.b16 %v632
    %v771 = vunpack.c.l.b16 %v633
    %v772 = vunpack.c.l.b16 %v634
    %v773 = vunpack.c.l.b16 %v635
    %v774 = vunpack.c.l.b16 %v636
    %v775 = vunpack.c.l.b16 %v637
    %v776 = vunpack.c.l.b16 %v638
    %v777 = vpack.c.b16 %v762, %v761
    %v778 = vpack.c.b16 %v764, %v763
    %v779 = vpack.c.b16 %v766, %v765
    %v780 = vpack.c.b16 %v768, %v767
    %v781 = vpack.c.b16 %v770, %v769
    %v782 = vpack.c.b16 %v772, %v771
    %v783 = vpack.c.b16 %v774, %v773
    %v784 = vpack.c.b16 %v776, %v775
    %793 = vmatprep.subr.bf16.mxu0 0
    %794 = vmatpush1.bf16.msra.mxu0 %v784
    %795 = vmatprep.subr.bf16.mxu0 0
    %796 = vmatpush1.bf16.msra.mxu0 %v783
    %797 = vmatprep.subr.bf16.mxu0 0
    %798 = vmatpush1.bf16.msra.mxu0 %v782
    %799 = vmatprep.subr.bf16.mxu0 0
    %800 = vmatpush1.bf16.msra.mxu0 %v781
    %801 = vmatprep.subr.bf16.mxu0 0
    %802 = vmatpush1.bf16.msra.mxu0 %v780
    %803 = vmatprep.subr.bf16.mxu0 0
    %804 = vmatpush1.bf16.msra.mxu0 %v779
    %805 = vmatprep.subr.bf16.mxu0 0
    %806 = vmatpush1.bf16.msra.mxu0 %v778
    %807 = vmatprep.subr.bf16.mxu0 0
    %808 = vmatpush1.bf16.msra.mxu0 %v777
    %809 = vmatprep.subr.bf16.mxu0 0
    %810 = vmatpush2.bf16.msra.mxu0 0
    %811 = vmatprep.subr.bf16.mxu0 0
    %812 = vmatpush2.bf16.msra.mxu0 0
    %813 = vmatprep.subr.bf16.mxu0 0
    %814 = vmatpush2.bf16.msra.mxu0 0
    %815 = vmatprep.subr.bf16.mxu0 0
    %816 = vmatpush2.bf16.msra.mxu0 0
    %817 = vmatprep.subr.bf16.mxu0 0
    %818 = vmatpush2.bf16.msra.mxu0 0
    %819 = vmatprep.subr.bf16.mxu0 0
    %820 = vmatpush2.bf16.msra.mxu0 0
    %821 = vmatprep.subr.bf16.mxu0 0
    %822 = vmatpush2.bf16.msra.mxu0 0
    %823 = vmatprep.subr.bf16.mxu0 0
    %824 = vmatpush2.bf16.msra.mxu0 0
    %825 = vmatprep.mubr.bf16.mxu0 0
    %826 = vmatmul.mubr.bf16.gmra.mxu0 %v619
    %v827 = vpop.f32.mrf.mxu0
    %v828 = vadd.f32 %v739, %v827
    %v829 = vpop.f32.mrf.mxu0
    %v830 = vpop.f32.mrf.mxu0
    %v831 = vadd.f32 %v742, %v830
    %v832 = vpop.f32.mrf.mxu0
    %833 = vdwg.mxu0
    %v835 = vlaneseq
    %v836 = vshrl.u32 %v835, 7
    %v837 = vsub.s32 0, %v836
    %v838 = vrot.slane %v621, %v837
    %v840 = vadd.f32 %v828, %v838
    %v841 = vadd.f32 %v831, %v838
    %v842 = vmax.f32 %v840, 0.0
    %v843 = vmax.f32 %v841, 0.0
    %v844 = vpack.c.bf16 %v843, %v842
    %v845 = vld [vmem:[%s1] sm:$0xf]
    %v847 = vsel %vm42, %v845, 0
    %849 = vmatprep.subr.bf16.mxu0 0
    %850 = vmatpush1.bf16.msra.mxu0 0
    %851 = vmatprep.subr.bf16.mxu0 0
    %852 = vmatpush1.bf16.msra.mxu0 0
    %853 = vmatprep.subr.bf16.mxu0 0
    %854 = vmatpush1.bf16.msra.mxu0 0
    %855 = vmatprep.subr.bf16.mxu0 0
    %856 = vmatpush1.bf16.msra.mxu0 0
    %857 = vmatprep.subr.bf16.mxu0 0
    %858 = vmatpush1.bf16.msra.mxu0 0
    %859 = vmatprep.subr.bf16.mxu0 0
    %860 = vmatpush1.bf16.msra.mxu0 0
    %861 = vmatprep.subr.bf16.mxu0 0
    %862 = vmatpush1.bf16.msra.mxu0 0
    %863 = vmatprep.subr.bf16.mxu0 0
    %864 = vmatpush1.bf16.msra.mxu0 %v844
    %865 = vmatprep.subr.bf16.mxu0 0
    %866 = vmatpush2.bf16.msra.mxu0 0
    %867 = vmatprep.subr.bf16.mxu0 0
    %868 = vmatpush2.bf16.msra.mxu0 0
    %869 = vmatprep.subr.bf16.mxu0 0
    %870 = vmatpush2.bf16.msra.mxu0 0
    %871 = vmatprep.subr.bf16.mxu0 0
    %872 = vmatpush2.bf16.msra.mxu0 0
    %873 = vmatprep.subr.bf16.mxu0 0
    %874 = vmatpush2.bf16.msra.mxu0 0
    %875 = vmatprep.subr.bf16.mxu0 0
    %876 = vmatpush2.bf16.msra.mxu0 0
    %877 = vmatprep.subr.bf16.mxu0 0
    %878 = vmatpush2.bf16.msra.mxu0 0
    %879 = vmatprep.subr.bf16.mxu0 0
    %880 = vmatpush2.bf16.msra.mxu0 0
    %881 = vmatprep.mubr.bf16.mxu0 0
    %882 = vmatmul.mubr.bf16.gmra.mxu0 %v847
    %v883 = vpop.f32.mrf.mxu0
    %v884 = vadd.f32 0.0, %v883
    %v885 = vpop.f32.mrf.mxu0
    %v886 = vpop.f32.mrf.mxu0
    %v887 = vpop.f32.mrf.mxu0
    %888 = vdwg.mxu0
    %889 = vst [vmem:[#allocation2] sm:$0xff] %v884
    %v890 = vpack.c.bf16 %v884, %v884
    %v891 = vld [vmem:[%s5] sm:$0xf]
    %v892 = vld [vmem:[%s5 + $0x4] sm:$0xf]
    %v893 = vld [vmem:[%s5 + $0x8] sm:$0xf]
    %v894 = vld [vmem:[%s5 + $0xc] sm:$0xf]
    %v895 = vld [vmem:[%s5 + $0x10] sm:$0xf]
    %v896 = vld [vmem:[%s5 + $0x14] sm:$0xf]
    %v897 = vld [vmem:[%s5 + $0x18] sm:$0xf]
    %v898 = vld [vmem:[%s5 + $0x1c] sm:$0xf]
    %v899 = vld [vmem:[%s5 + $0x20] sm:$0xf]
    %v900 = vld [vmem:[%s5 + $0x24] sm:$0xf]
    %v901 = vld [vmem:[%s5 + $0x28] sm:$0xf]
    %v902 = vld [vmem:[%s5 + $0x2c] sm:$0xf]
    %v903 = vld [vmem:[%s5 + $0x30] sm:$0xf]
    %v904 = vld [vmem:[%s5 + $0x34] sm:$0xf]
    %v905 = vld [vmem:[%s5 + $0x38] sm:$0xf]
    %v906 = vld [vmem:[%s5 + $0x3c] sm:$0xf]
    %s907 = scalar_lea.vmem %s4, 3
    %v908 = vld [vmem:[%s907] sm:$0x1]
    %v910 = vlaneseq
    %v911 = vshrl.u32 %v910, 7
    %v912 = vsub.s32 0, %v911
    %v913 = vrot.slane %v908, %v912
    %v931 = vunpack.c.l.b16 %v891
    %v932 = vunpack.c.l.b16 %v892
    %v933 = vunpack.c.l.b16 %v893
    %v934 = vunpack.c.l.b16 %v894
    %v935 = vunpack.c.l.b16 %v895
    %v936 = vunpack.c.l.b16 %v896
    %v937 = vunpack.c.l.b16 %v897
    %v938 = vunpack.c.l.b16 %v898
    %v939 = vunpack.c.l.b16 %v899
    %v940 = vunpack.c.l.b16 %v900
    %v941 = vunpack.c.l.b16 %v901
    %v942 = vunpack.c.l.b16 %v902
    %v943 = vunpack.c.l.b16 %v903
    %v944 = vunpack.c.l.b16 %v904
    %v945 = vunpack.c.l.b16 %v905
    %v946 = vunpack.c.l.b16 %v906
    %v947 = vpack.c.b16 %v932, %v931
    %v948 = vpack.c.b16 %v934, %v933
    %v949 = vpack.c.b16 %v936, %v935
    %v950 = vpack.c.b16 %v938, %v937
    %v951 = vpack.c.b16 %v940, %v939
    %v952 = vpack.c.b16 %v942, %v941
    %v953 = vpack.c.b16 %v944, %v943
    %v954 = vpack.c.b16 %v946, %v945
    %963 = vmatprep.subr.bf16.mxu0 0
    %964 = vmatpush1.bf16.msra.mxu0 %v954
    %965 = vmatprep.subr.bf16.mxu0 0
    %966 = vmatpush1.bf16.msra.mxu0 %v953
    %967 = vmatprep.subr.bf16.mxu0 0
    %968 = vmatpush1.bf16.msra.mxu0 %v952
    %969 = vmatprep.subr.bf16.mxu0 0
    %970 = vmatpush1.bf16.msra.mxu0 %v951
    %971 = vmatprep.subr.bf16.mxu0 0
    %972 = vmatpush1.bf16.msra.mxu0 %v950
    %973 = vmatprep.subr.bf16.mxu0 0
    %974 = vmatpush1.bf16.msra.mxu0 %v949
    %975 = vmatprep.subr.bf16.mxu0 0
    %976 = vmatpush1.bf16.msra.mxu0 %v948
    %977 = vmatprep.subr.bf16.mxu0 0
    %978 = vmatpush1.bf16.msra.mxu0 %v947
    %979 = vmatprep.subr.bf16.mxu0 0
    %980 = vmatpush2.bf16.msra.mxu0 0
    %981 = vmatprep.subr.bf16.mxu0 0
    %982 = vmatpush2.bf16.msra.mxu0 0
    %983 = vmatprep.subr.bf16.mxu0 0
    %984 = vmatpush2.bf16.msra.mxu0 0
    %985 = vmatprep.subr.bf16.mxu0 0
    %986 = vmatpush2.bf16.msra.mxu0 0
    %987 = vmatprep.subr.bf16.mxu0 0
    %988 = vmatpush2.bf16.msra.mxu0 0
    %989 = vmatprep.subr.bf16.mxu0 0
    %990 = vmatpush2.bf16.msra.mxu0 0
    %991 = vmatprep.subr.bf16.mxu0 0
    %992 = vmatpush2.bf16.msra.mxu0 0
    %993 = vmatprep.subr.bf16.mxu0 0
    %994 = vmatpush2.bf16.msra.mxu0 0
    %995 = vmatprep.mubr.bf16.mxu0 0
    %996 = vmatmul.mubr.bf16.gmra.mxu0 %v890
    %v997 = vpop.f32.mrf.mxu0
    %v998 = vadd.f32 %v913, %v997
    %v999 = vpop.f32.mrf.mxu0
    %v1000 = vpop.f32.mrf.mxu0
    %v1001 = vpop.f32.mrf.mxu0
    %1002 = vdwg.mxu0
    %1003 = vst [vmem:[%s7] sm:$0xff] %v998
    // Predicated region
    $region26: #{sage_model_forward.1} parent=1 // pred_check
      _
    $region27: #{sage_model_forward.1} parent=1 // pred_check_branch
      %1005 = sbr.rel (0) target = $region29
    $region28: #{sage_model_forward.1} parent=1 // pred_region
      %s1007 = ssub.s32 128, 128
      %1008 = vsyncadd [#allocation3], %s1007
      %s1010 = sshll.u32 [#allocation2], 4
      %s1011 = int_to_ptr.vmem [resolvable:$true] %s1010
      %1013 = dma.vmem_to_hbm [thread:$0]  %s1011, 128, %s6, [#allocation3]
    $region29: #{sage_model_forward.1} parent=1 // pred_fallthru
      _
    // Predicated region
    $region30: #{sage_model_forward.1} parent=1 // pred_check
      _
    $region31: #{sage_model_forward.1} parent=1 // pred_check_branch
      %1015 = sbr.rel (0) target = $region33
    $region32: #{sage_model_forward.1} parent=1 // pred_region
      _
    $region33: #{sage_model_forward.1} parent=1 // pred_fallthru
      _
    // Predicated region
    $region34: #{sage_model_forward.1} parent=1 // pred_check
      _
    $region35: #{sage_model_forward.1} parent=1 // pred_check_branch
      %1017 = sbr.rel (0) target = $region37
    $region36: #{sage_model_forward.1} parent=1 // pred_region
      %1018 = dma.done [#allocation3], 128
    $region37: #{sage_model_forward.1} parent=1 // pred_fallthru
      _
    // Predicated region
    $region38: #{sage_model_forward.1} parent=1 // pred_check
      _
    $region39: #{sage_model_forward.1} parent=1 // pred_check_branch
      %1020 = sbr.rel (0) target = $region41
    $region40: #{sage_model_forward.1} parent=1 // pred_region
      _
    $region41: #{sage_model_forward.1} parent=1 // pred_fallthru
      _
    %1021 = vsyncpa [#allocation3], 1

</llo_original>
